<compile_context>
chip_gen: v7x
topology: tpu7x:2x2x1
jax: 0.10.0
libtpu: 0.0.40
codegen_flags: <defaults>
</compile_context>

<pallas_src>
import jax
import jax.numpy as jnp
import numpy as np
from jax.experimental import pallas as pl
from jax.experimental.pallas import tpu as pltpu


# ---------------------------------------------------------------------------
# Fused path
# ---------------------------------------------------------------------------

def _make_fused_kernel(n_ap, n_qr, cout, sw, w_len, lanes):
    """P[(q*sw+r)*Cout+co, j] = sum_{ci,(a,p)} w[co,ci,a,p,q,r] * x_ap[ci, j];
    out[co, j0] = sum_{q,r} P[(q*sw+r)*Cout+co, j0 + q*W + r]."""

    def kernel(w_ref, *refs):
        x_refs = refs[:-1]
        o_ref = refs[-1]
        p_acc = None
        for i in range(n_ap):                       # accumulate over (a, p)
            contrib = jnp.dot(w_ref[i], x_refs[i][...],
                              preferred_element_type=jnp.float32)
            p_acc = contrib if p_acc is None else p_acc + contrib
        acc = p_acc[0:cout, :]                      # (q, r) == (0, 0)
        for g in range(1, n_qr):                    # combine (h, w) offsets
            q, r = divmod(g, sw)
            shift = q * w_len + r
            piece = p_acc[g * cout:(g + 1) * cout, :]
            # shift left by `shift`: lane j0 picks up x at (ho*sh+q, wo*sw+r).
            acc = acc + jnp.roll(piece, -shift, axis=1)
        o_ref[...] = acc.astype(o_ref.dtype)

    return kernel


def _pick_hc(ho, sh, w_len, c_in, c_out, n_ap, g_rows, itemsize, n_outer):
    """h-windows per grid step: largest divisor of Ho whose lane block is a
    multiple of 128 and whose per-step footprint fits comfortably in VMEM on
    every TPU generation; prefers >= 2 grid steps (v7x megacore)."""
    budget = 10 * 1024 * 1024
    best = None
    for hc in range(ho, 0, -1):
        if ho % hc:
            continue
        lanes = hc * sh * w_len
        if lanes % 128:
            continue
        per_step = lanes * (2 * n_ap * c_in * itemsize   # double-buffered x blocks
                            + 4 * g_rows                 # P accumulator (f32)
                            + 4 * 4 * c_out              # shifted temps + acc (f32)
                            + 2 * c_out * itemsize)      # double-buffered out block
        if per_step > budget:
            continue
        if best is None:
            best = hc
        if n_outer * (ho // hc) >= 2:
            return hc
    return best


def _downconv4d_fused(x, weight, sample_factor, hc):
    B, C, T, D, H, W = x.shape
    st, sd, sh, sw = sample_factor
    Cout = weight.shape[0]
    To, Do, Ho = T // st, D // sd, H // sh
    Hd = Ho * sh                     # dense h rows actually computed
    L = hc * sh * W                  # lanes per grid step (multiple of 128)
    NH = Ho // hc                    # h-chunks per (b, to, do)
    n_ap, n_qr = st * sd, sh * sw
    G = n_qr * Cout
    K = C * n_ap * n_qr

    hw_blocks = (H * W) // L         # exact: hc*sh divides H
    dhw_blocks = D * hw_blocks

    # Free (layout-preserving) reshape of x; tiny weight re-stack.
    x3 = x.reshape(B, C, T * D * H * W)
    wstack = jnp.transpose(weight, (2, 3, 4, 5, 0, 1)).reshape(n_ap, G, C)

    in_specs = [pl.BlockSpec((n_ap, G, C), lambda b, to, do, h: (0, 0, 0))]
    for a in range(st):
        for p in range(sd):
            in_specs.append(pl.BlockSpec(
                (None, C, L),
                lambda b, to, do, h, a=a, p=p: (
                    b, 0,
                    (to * st + a) * dhw_blocks + (do * sd + p) * hw_blocks + h)))

    out_specs = pl.BlockSpec(
        (None, Cout, L),
        lambda b, to, do, h: (b, 0, (to * Do + do) * NH + h))

    n_dense = B * To * Do * Hd * W
    cost = pl.CostEstimate(
        flops=2 * K * Cout * n_dense,
        transcendentals=0,
        bytes_accessed=(n_ap * C * n_dense + Cout * n_dense) * x.dtype.itemsize
        + wstack.size * wstack.dtype.itemsize)

    out_dense = pl.pallas_call(
        _make_fused_kernel(n_ap, n_qr, Cout, sw, W, L),
        out_shape=jax.ShapeDtypeStruct((B, Cout, To * Do * Hd * W), x.dtype),
        grid=(B, To, Do, NH),
        in_specs=in_specs,
        out_specs=out_specs,
        compiler_params=pltpu.CompilerParams(
            dimension_semantics=("parallel", "parallel", "parallel", "parallel"),
            vmem_limit_bytes=32 * 1024 * 1024),
        cost_estimate=cost,
    )(wstack, *([x3] * n_ap))

    # Cheap, output-sized strided subsample; no transpose needed.
    return out_dense.reshape(B, Cout, To, Do, Hd, W)[:, :, :, :, ::sh, ::sw]


# ---------------------------------------------------------------------------
# Fallback path (previous validated im2col formulation) for shapes the fused
# tiling cannot express (e.g. no 128-multiple lane block available).
# ---------------------------------------------------------------------------

def _downconv_matmul_kernel(w_ref, p_ref, o_ref):
    o_ref[...] = jnp.dot(w_ref[...], p_ref[...],
                         preferred_element_type=jnp.float32).astype(o_ref.dtype)


def _pick_tn(n_vox, k, cout, itemsize):
    if n_vox % 128 != 0:
        return n_vox
    try:
        vmem = pltpu.get_tpu_info().vmem_capacity_bytes
    except Exception:
        vmem = 64 * 1024 * 1024
    budget = min(vmem // 8, 8 * 1024 * 1024)
    best = None
    for tn in (8192, 4096, 2048, 1024, 512, 256, 128):
        if n_vox % tn != 0:
            continue
        if 2 * (k + cout) * tn * itemsize > budget:
            continue
        if best is None:
            best = tn
        if n_vox // tn >= 2:
            return tn
    return best if best is not None else 128


def _downconv4d_im2col(x, weight, sample_factor):
    B, C, T, D, H, W = x.shape
    st, sd, sh, sw = sample_factor
    Cout = weight.shape[0]
    To, Do, Ho, Wo = T // st, D // sd, H // sh, W // sw
    K = C * st * sd * sh * sw
    N = B * To * Do * Ho * Wo

    x = x[:, :, :To * st, :Do * sd, :Ho * sh, :Wo * sw]
    xr = x.reshape(B, C, To, st, Do, sd, Ho, sh, Wo, sw)
    patches = jnp.transpose(xr, (1, 3, 5, 7, 9, 0, 2, 4, 6, 8)).reshape(K, N)
    w2d = weight.reshape(Cout, K)

    tn = _pick_tn(N, K, Cout, x.dtype.itemsize)

    out2d = pl.pallas_call(
        _downconv_matmul_kernel,
        out_shape=jax.ShapeDtypeStruct((Cout, N), x.dtype),
        grid=(N // tn,),
        in_specs=[
            pl.BlockSpec((Cout, K), lambda n: (0, 0)),
            pl.BlockSpec((K, tn), lambda n: (0, n)),
        ],
        out_specs=pl.BlockSpec((Cout, tn), lambda n: (0, n)),
        compiler_params=pltpu.CompilerParams(
            dimension_semantics=("parallel",)),
    )(w2d, patches)

    out = out2d.reshape(Cout, B, To, Do, Ho, Wo)
    return jnp.transpose(out, (1, 0, 2, 3, 4, 5))


# ---------------------------------------------------------------------------
# Public entry point + reference
# ---------------------------------------------------------------------------

def downconv4d(x, weight, sample_factor=(2, 2, 2, 2)):
    """_DownConv(temporal=True).forward.

    x:      (B, Cin, T, D, H, W)
    weight: (Cout, Cin, st, sd, sh, sw) with (st, sd, sh, sw) == sample_factor
    returns (B, Cout, T//st, D//sd, H//sh, W//sw)
    """
    B, C, T, D, H, W = x.shape
    st, sd, sh, sw = sample_factor
    Cout = weight.shape[0]
    hc = None
    if H % sh == 0 and W % sw == 0 and T >= st and D >= sd:
        hc = _pick_hc(H // sh, sh, W, C, Cout, st * sd, sh * sw * Cout,
                      x.dtype.itemsize,
                      n_outer=B * (T // st) * (D // sd))
    if hc is not None:
        return _downconv4d_fused(x, weight, sample_factor, hc)
    return _downconv4d_im2col(x, weight, sample_factor)


def downconv4d_ref(x, weight, sample_factor=(2, 2, 2, 2)):
    """Pure-JAX reference of _DownConv(temporal=True) (kernel==stride 4D conv)."""
    B, C, T, D, H, W = x.shape
    st, sd, sh, sw = sample_factor
    xr = x.reshape(B, C, T // st, st, D // sd, sd, H // sh, sh, W // sw, sw)
    return jnp.einsum('bctadphqwr,ocapqr->botdhw', xr, weight).astype(x.dtype)


if __name__ == "__main__":
    key = jax.random.PRNGKey(0)
    kx, kw = jax.random.split(key)

    # (B, C=n_features, T, D, H, W) -- small 4D U-Net style activation
    B, C, T, D, H, W = 2, 4, 8, 8, 8, 16
    sample_factor = (2, 2, 2, 2)

    x = jax.random.normal(kx, (B, C, T, D, H, W), dtype=jnp.float32)
    fan_in = C * int(np.prod(sample_factor))
    weight = jax.random.normal(kw, (C, C) + sample_factor,
                               dtype=jnp.float32) / np.sqrt(fan_in)

    y = downconv4d(x, weight, sample_factor=sample_factor)
    y = jax.block_until_ready(y)

    y_ref = downconv4d_ref(x, weight, sample_factor=sample_factor)

    assert y.shape == (B, C, T // 2, D // 2, H // 2, W // 2), y.shape
    np.testing.assert_allclose(np.asarray(y), np.asarray(y_ref),
                               rtol=1e-3, atol=1e-3)

    print("KERNEL_OK")
</pallas_src>

<mosaic_0001>
module attributes {stable_mosaic.version = 11 : i64} {
  func.func @kernel(%arg0: i32, %arg1: i32, %arg2: i32, %arg3: i32, %arg4: memref<4x16x4xf32, #tpu.memory_space<vmem>>, %arg5: memref<1x4x128xf32, #tpu.memory_space<vmem>>, %arg6: memref<1x4x128xf32, #tpu.memory_space<vmem>>, %arg7: memref<1x4x128xf32, #tpu.memory_space<vmem>>, %arg8: memref<1x4x128xf32, #tpu.memory_space<vmem>>, %arg9: memref<1x4x128xf32, #tpu.memory_space<vmem>>) attributes {dimension_semantics = [#tpu.dimension_semantics<parallel>, #tpu.dimension_semantics<parallel>, #tpu.dimension_semantics<parallel>, #tpu.dimension_semantics<parallel>], iteration_bounds = array<i64: 2, 4, 4, 1>, scalar_prefetch = 0 : i64, scratch_operands = 0 : i64, tpu.core_type = #tpu.core_type<tc>, window_params = [{pipeline_mode = #tpu.pipeline_mode<synchronous>, transform_indices = @transform_0, window_bounds = array<i64: 4, 16, 4>}, {transform_indices = @transform_1, window_bounds = array<i64: 1, 4, 128>}, {transform_indices = @transform_2, window_bounds = array<i64: 1, 4, 128>}, {transform_indices = @transform_3, window_bounds = array<i64: 1, 4, 128>}, {transform_indices = @transform_4, window_bounds = array<i64: 1, 4, 128>}, {transform_indices = @transform_5, window_bounds = array<i64: 1, 4, 128>}]} {
    %c0 = arith.constant 0 : index
    %c0_0 = arith.constant 0 : index
    %c0_1 = arith.constant 0 : index
    %0 = vector.load %arg4[%c0, %c0_0, %c0_1] : memref<4x16x4xf32, #tpu.memory_space<vmem>>, vector<1x16x4xf32>
    %1 = vector.shape_cast %0 : vector<1x16x4xf32> to vector<16x4xf32>
    %c0_2 = arith.constant 0 : index
    %c0_3 = arith.constant 0 : index
    %c0_4 = arith.constant 0 : index
    %2 = vector.load %arg5[%c0_2, %c0_3, %c0_4] : memref<1x4x128xf32, #tpu.memory_space<vmem>>, vector<1x4x128xf32>
    %3 = vector.shape_cast %2 : vector<1x4x128xf32> to vector<4x128xf32>
    %cst = arith.constant dense<0.000000e+00> : vector<16x128xf32>
    %4 = tpu.matmul %1, %3, %cst {dimension_numbers = #tpu.dot_dimension_numbers<[1], [0], [0], [1], [0, 0, 1, 1], [], []>} : vector<16x4xf32>, vector<4x128xf32>, vector<16x128xf32> -> vector<16x128xf32>
    %c1 = arith.constant 1 : index
    %c0_5 = arith.constant 0 : index
    %c0_6 = arith.constant 0 : index
    %5 = vector.load %arg4[%c1, %c0_5, %c0_6] : memref<4x16x4xf32, #tpu.memory_space<vmem>>, vector<1x16x4xf32>
    %6 = vector.shape_cast %5 : vector<1x16x4xf32> to vector<16x4xf32>
    %c0_7 = arith.constant 0 : index
    %c0_8 = arith.constant 0 : index
    %c0_9 = arith.constant 0 : index
    %7 = vector.load %arg6[%c0_7, %c0_8, %c0_9] : memref<1x4x128xf32, #tpu.memory_space<vmem>>, vector<1x4x128xf32>
    %8 = vector.shape_cast %7 : vector<1x4x128xf32> to vector<4x128xf32>
    %cst_10 = arith.constant dense<0.000000e+00> : vector<16x128xf32>
    %9 = tpu.matmul %6, %8, %cst_10 {dimension_numbers = #tpu.dot_dimension_numbers<[1], [0], [0], [1], [0, 0, 1, 1], [], []>} : vector<16x4xf32>, vector<4x128xf32>, vector<16x128xf32> -> vector<16x128xf32>
    %10 = arith.addf %4, %9 : vector<16x128xf32>
    %c2 = arith.constant 2 : index
    %c0_11 = arith.constant 0 : index
    %c0_12 = arith.constant 0 : index
    %11 = vector.load %arg4[%c2, %c0_11, %c0_12] : memref<4x16x4xf32, #tpu.memory_space<vmem>>, vector<1x16x4xf32>
    %12 = vector.shape_cast %11 : vector<1x16x4xf32> to vector<16x4xf32>
    %c0_13 = arith.constant 0 : index
    %c0_14 = arith.constant 0 : index
    %c0_15 = arith.constant 0 : index
    %13 = vector.load %arg7[%c0_13, %c0_14, %c0_15] : memref<1x4x128xf32, #tpu.memory_space<vmem>>, vector<1x4x128xf32>
    %14 = vector.shape_cast %13 : vector<1x4x128xf32> to vector<4x128xf32>
    %cst_16 = arith.constant dense<0.000000e+00> : vector<16x128xf32>
    %15 = tpu.matmul %12, %14, %cst_16 {dimension_numbers = #tpu.dot_dimension_numbers<[1], [0], [0], [1], [0, 0, 1, 1], [], []>} : vector<16x4xf32>, vector<4x128xf32>, vector<16x128xf32> -> vector<16x128xf32>
    %16 = arith.addf %10, %15 : vector<16x128xf32>
    %c3 = arith.constant 3 : index
    %c0_17 = arith.constant 0 : index
    %c0_18 = arith.constant 0 : index
    %17 = vector.load %arg4[%c3, %c0_17, %c0_18] : memref<4x16x4xf32, #tpu.memory_space<vmem>>, vector<1x16x4xf32>
    %18 = vector.shape_cast %17 : vector<1x16x4xf32> to vector<16x4xf32>
    %c0_19 = arith.constant 0 : index
    %c0_20 = arith.constant 0 : index
    %c0_21 = arith.constant 0 : index
    %19 = vector.load %arg8[%c0_19, %c0_20, %c0_21] : memref<1x4x128xf32, #tpu.memory_space<vmem>>, vector<1x4x128xf32>
    %20 = vector.shape_cast %19 : vector<1x4x128xf32> to vector<4x128xf32>
    %cst_22 = arith.constant dense<0.000000e+00> : vector<16x128xf32>
    %21 = tpu.matmul %18, %20, %cst_22 {dimension_numbers = #tpu.dot_dimension_numbers<[1], [0], [0], [1], [0, 0, 1, 1], [], []>} : vector<16x4xf32>, vector<4x128xf32>, vector<16x128xf32> -> vector<16x128xf32>
    %22 = arith.addf %16, %21 : vector<16x128xf32>
    %23 = vector.extract_strided_slice %22 {offsets = [0, 0], sizes = [4, 128], strides = [1, 1]} : vector<16x128xf32> to vector<4x128xf32>
    %24 = vector.extract_strided_slice %22 {offsets = [4, 0], sizes = [4, 128], strides = [1, 1]} : vector<16x128xf32> to vector<4x128xf32>
    %25 = vector.extract_strided_slice %24 {offsets = [0, 1], sizes = [4, 127], strides = [1, 1]} : vector<4x128xf32> to vector<4x127xf32>
    %26 = vector.extract_strided_slice %24 {offsets = [0, 0], sizes = [4, 1], strides = [1, 1]} : vector<4x128xf32> to vector<4x1xf32>
    %27 = tpu.concatenate %25, %26 in 1 : vector<4x127xf32>, vector<4x1xf32> -> vector<4x128xf32>
    %28 = arith.addf %23, %27 : vector<4x128xf32>
    %29 = vector.extract_strided_slice %22 {offsets = [8, 0], sizes = [4, 128], strides = [1, 1]} : vector<16x128xf32> to vector<4x128xf32>
    %30 = vector.extract_strided_slice %29 {offsets = [0, 16], sizes = [4, 112], strides = [1, 1]} : vector<4x128xf32> to vector<4x112xf32>
    %31 = vector.extract_strided_slice %29 {offsets = [0, 0], sizes = [4, 16], strides = [1, 1]} : vector<4x128xf32> to vector<4x16xf32>
    %32 = tpu.concatenate %30, %31 in 1 : vector<4x112xf32>, vector<4x16xf32> -> vector<4x128xf32>
    %33 = arith.addf %28, %32 : vector<4x128xf32>
    %34 = vector.extract_strided_slice %22 {offsets = [12, 0], sizes = [4, 128], strides = [1, 1]} : vector<16x128xf32> to vector<4x128xf32>
    %35 = vector.extract_strided_slice %34 {offsets = [0, 17], sizes = [4, 111], strides = [1, 1]} : vector<4x128xf32> to vector<4x111xf32>
    %36 = vector.extract_strided_slice %34 {offsets = [0, 0], sizes = [4, 17], strides = [1, 1]} : vector<4x128xf32> to vector<4x17xf32>
    %37 = tpu.concatenate %35, %36 in 1 : vector<4x111xf32>, vector<4x17xf32> -> vector<4x128xf32>
    %38 = arith.addf %33, %37 : vector<4x128xf32>
    %c0_23 = arith.constant 0 : index
    %c0_24 = arith.constant 0 : index
    %c0_25 = arith.constant 0 : index
    %39 = vector.load %arg9[%c0_23, %c0_24, %c0_25] : memref<1x4x128xf32, #tpu.memory_space<vmem>>, vector<1x4x128xf32>
    %40 = vector.shape_cast %39 : vector<1x4x128xf32> to vector<4x128xf32>
    %41 = vector.shape_cast %38 : vector<4x128xf32> to vector<1x4x128xf32>
    tpu.vector_store %arg9[%c0_23, %c0_24, %c0_25], %41 {strides = array<i32>} : memref<1x4x128xf32, #tpu.memory_space<vmem>>, vector<1x4x128xf32>,
    return
  }
  func.func @transform_0(%arg0: i32, %arg1: i32, %arg2: i32, %arg3: i32) -> (i32, i32, i32) {
    %c0_i32 = arith.constant 0 : i32
    %c0_i32_0 = arith.constant 0 : i32
    %c0_i32_1 = arith.constant 0 : i32
    %c0_i32_2 = arith.constant 0 : i32
    return %c0_i32, %c0_i32_0, %c0_i32_1 : i32, i32, i32
  }
  func.func @transform_1(%arg0: i32, %arg1: i32, %arg2: i32, %arg3: i32) -> (i32, i32, i32) {
    %c2_i32 = arith.constant 2 : i32
    %0 = arith.muli %arg1, %c2_i32 : i32
    %c0_i32 = arith.constant 0 : i32
    %1 = arith.addi %0, %c0_i32 : i32
    %c8_i32 = arith.constant 8 : i32
    %2 = arith.muli %1, %c8_i32 : i32
    %c2_i32_0 = arith.constant 2 : i32
    %3 = arith.muli %arg2, %c2_i32_0 : i32
    %c0_i32_1 = arith.constant 0 : i32
    %4 = arith.addi %3, %c0_i32_1 : i32
    %c1_i32 = arith.constant 1 : i32
    %5 = arith.muli %4, %c1_i32 : i32
    %6 = arith.addi %2, %5 : i32
    %7 = arith.addi %6, %arg3 : i32
    %c0_i32_2 = arith.constant 0 : i32
    %c0_i32_3 = arith.constant 0 : i32
    return %arg0, %c0_i32_2, %7 : i32, i32, i32
  }
  func.func @transform_2(%arg0: i32, %arg1: i32, %arg2: i32, %arg3: i32) -> (i32, i32, i32) {
    %c2_i32 = arith.constant 2 : i32
    %0 = arith.muli %arg1, %c2_i32 : i32
    %c0_i32 = arith.constant 0 : i32
    %1 = arith.addi %0, %c0_i32 : i32
    %c8_i32 = arith.constant 8 : i32
    %2 = arith.muli %1, %c8_i32 : i32
    %c2_i32_0 = arith.constant 2 : i32
    %3 = arith.muli %arg2, %c2_i32_0 : i32
    %c1_i32 = arith.constant 1 : i32
    %4 = arith.addi %3, %c1_i32 : i32
    %c1_i32_1 = arith.constant 1 : i32
    %5 = arith.muli %4, %c1_i32_1 : i32
    %6 = arith.addi %2, %5 : i32
    %7 = arith.addi %6, %arg3 : i32
    %c0_i32_2 = arith.constant 0 : i32
    %c0_i32_3 = arith.constant 0 : i32
    return %arg0, %c0_i32_2, %7 : i32, i32, i32
  }
  func.func @transform_3(%arg0: i32, %arg1: i32, %arg2: i32, %arg3: i32) -> (i32, i32, i32) {
    %c2_i32 = arith.constant 2 : i32
    %0 = arith.muli %arg1, %c2_i32 : i32
    %c1_i32 = arith.constant 1 : i32
    %1 = arith.addi %0, %c1_i32 : i32
    %c8_i32 = arith.constant 8 : i32
    %2 = arith.muli %1, %c8_i32 : i32
    %c2_i32_0 = arith.constant 2 : i32
    %3 = arith.muli %arg2, %c2_i32_0 : i32
    %c0_i32 = arith.constant 0 : i32
    %4 = arith.addi %3, %c0_i32 : i32
    %c1_i32_1 = arith.constant 1 : i32
    %5 = arith.muli %4, %c1_i32_1 : i32
    %6 = arith.addi %2, %5 : i32
    %7 = arith.addi %6, %arg3 : i32
    %c0_i32_2 = arith.constant 0 : i32
    %c0_i32_3 = arith.constant 0 : i32
    return %arg0, %c0_i32_2, %7 : i32, i32, i32
  }
  func.func @transform_4(%arg0: i32, %arg1: i32, %arg2: i32, %arg3: i32) -> (i32, i32, i32) {
    %c2_i32 = arith.constant 2 : i32
    %0 = arith.muli %arg1, %c2_i32 : i32
    %c1_i32 = arith.constant 1 : i32
    %1 = arith.addi %0, %c1_i32 : i32
    %c8_i32 = arith.constant 8 : i32
    %2 = arith.muli %1, %c8_i32 : i32
    %c2_i32_0 = arith.constant 2 : i32
    %3 = arith.muli %arg2, %c2_i32_0 : i32
    %c1_i32_1 = arith.constant 1 : i32
    %4 = arith.addi %3, %c1_i32_1 : i32
    %c1_i32_2 = arith.constant 1 : i32
    %5 = arith.muli %4, %c1_i32_2 : i32
    %6 = arith.addi %2, %5 : i32
    %7 = arith.addi %6, %arg3 : i32
    %c0_i32 = arith.constant 0 : i32
    %c0_i32_3 = arith.constant 0 : i32
    return %arg0, %c0_i32, %7 : i32, i32, i32
  }
  func.func @transform_5(%arg0: i32, %arg1: i32, %arg2: i32, %arg3: i32) -> (i32, i32, i32) {
    %c4_i32 = arith.constant 4 : i32
    %0 = arith.muli %arg1, %c4_i32 : i32
    %1 = arith.addi %0, %arg2 : i32
    %c1_i32 = arith.constant 1 : i32
    %2 = arith.muli %1, %c1_i32 : i32
    %3 = arith.addi %2, %arg3 : i32
    %c0_i32 = arith.constant 0 : i32
    %c0_i32_0 = arith.constant 0 : i32
    return %arg0, %c0_i32, %3 : i32, i32, i32
  }
}

</mosaic_0001>

<llo_original>
// kernel: tpu_custom_call.1
$region0: #{tpu_custom_call.1}
  #allocation0 [shape = 'u32[]', space=smem, size = 0x4, offset = 0x4, fixed_abs, tag = 'smem constant byte address 0x4 - core index']
  #allocation1 [shape = 'u32[144,128]{1,0:T(1,128)}', space=vmem, size = 0x12000, scoped, tag = 'internal scratch']
  %s0 = inlined_call_operand.vmem [shape: f32[4,16,4], index: 0, kind: input, shape index: {}]
  %s1 = inlined_call_operand.hbm [shape: f32[2,4,8192], index: 1, kind: input, shape index: {}]
  %s2 = inlined_call_operand.hbm [shape: f32[2,4,8192], index: 2, kind: input, shape index: {}]
  %s3 = inlined_call_operand.hbm [shape: f32[2,4,8192], index: 3, kind: input, shape index: {}]
  %s4 = inlined_call_operand.hbm [shape: f32[2,4,8192], index: 4, kind: input, shape index: {}]
  %s5 = inlined_call_operand.hbm [shape: f32[2,4,2048], index: 5, kind: output, shape index: {}]
  %s6 = sld [smem:[#allocation0]]
  $region69: #{tpu_custom_call.1} parent=0
    _
  %s8 = ssub.s32 1, %s6
  %s9 = scalar_select 0, %s8, %s6
  $region1: #{tpu_custom_call.1} parent=0
    #allocation2 [shape = 'u8[4096]{0}', space=vmem, size = 0x1000, scoped, tag = 'input window, operand 1']
    #allocation3 [shape = 's32[2]{0}', space=sflag, size = 0x8, scoped, tag = 'scoped memory for tpu_custom_call.1']
    #allocation4 [shape = 's32[2]{0}', space=sflag, size = 0x8, scoped, tag = 'scoped memory for tpu_custom_call.1']
    #allocation5 [shape = 'u8[4096]{0}', space=vmem, size = 0x1000, scoped, tag = 'input window, operand 2']
    #allocation6 [shape = 's32[2]{0}', space=sflag, size = 0x8, scoped, tag = 'scoped memory for tpu_custom_call.1']
    #allocation7 [shape = 'u8[4096]{0}', space=vmem, size = 0x1000, scoped, tag = 'input window, operand 3']
    #allocation8 [shape = 'u8[4096]{0}', space=vmem, size = 0x1000, scoped, tag = 'input window, operand 4']
    #allocation9 [shape = 's32[2]{0}', space=sflag, size = 0x8, scoped, tag = 'scoped memory for tpu_custom_call.1']
    #allocation10 [shape = 'u8[4096]{0}', space=vmem, size = 0x1000, scoped, tag = 'output window, operand 0']
    %10 = vsyncpa [#allocation3], 0
    %s11 = scalar_lea.sflag [#allocation3], 1
    %12 = vsyncpa %s11, 0
    %13 = vsyncpa [#allocation6], 0
    %s14 = scalar_lea.sflag [#allocation6], 1
    %15 = vsyncpa %s14, 0
    %16 = vsyncpa [#allocation9], 0
    %s17 = scalar_lea.sflag [#allocation9], 1
    %18 = vsyncpa %s17, 0
    %19 = vsyncpa [#allocation4], 0
    %s20 = scalar_lea.sflag [#allocation4], 1
    %21 = vsyncpa %s20, 0
    loop: start=0, step=1, limit=34
    $region2: #{tpu_custom_call.1} parent=1 // loop_pre_header
      _
    $region3: #{tpu_custom_call.1} parent=1 // loop_header
      %s23 = sphi 0, %s27
      %p24 = scmp.ge.s32.totalorder %s23, 34
      %s30 = sphi 0, %s56
      %s31 = sphi 0, %s52
      %s32 = sphi 0, %s48
      %s33 = sphi 0, %s44
      %s34 = sphi 0, %s30
      %s35 = sphi 0, %s31
      %s36 = sphi 0, %s32
      %s37 = sphi 0, %s33
      %s38 = sphi 0, %s34
      %s39 = sphi 0, %s35
      %s40 = sphi 0, %s36
      %s41 = sphi 0, %s37
      %s57 = sphi 0, %s57
      %s59 = sphi 0, %s57
      %s60 = sphi 0, %s59
      %s74 = sphi 0, %s60
      %s90 = sphi 0, %s92
      %s93 = sphi 0, %s90
      %s94 = sphi 0, %s93
      %s110 = sphi 0, %s94
      %s128 = sphi 0, %s130
      %s131 = sphi 0, %s128
      %s132 = sphi 0, %s131
      %s148 = sphi 0, %s132
      %s168 = sphi 0, %s170
      %s171 = sphi 0, %s168
      %s172 = sphi 0, %s171
      %s188 = sphi 0, %s172
      %s210 = sphi 0, %s212
      %s213 = sphi 0, %s210
      %s214 = sphi 0, %s213
      %s230 = sphi 0, %s214
      %s244 = sphi 0, %s246
      %s247 = sphi 0, %s244
      %s248 = sphi 0, %s247
      %s264 = sphi 0, %s248
    $region4: #{tpu_custom_call.1} parent=1 // loop_header_branch
      %26 = sbr.rel (%p24) target = $region8
    $region5: #{tpu_custom_call.1} parent=1 // loop_body
      %s28 = ssub.s32 %s23, 1
      %s29 = ssub.s32 %s23, 2
      %s42 = sadd.s32 1, %s33
      %p43 = scmp.ge.s32.totalorder %s42, 1
      %s44 = scalar_select %p43, 0, %s42
      %s45 = sadd.s32 1, %s32
      %s46 = scalar_select %p43, %s45, %s32
      %p47 = scmp.ge.s32.totalorder %s46, 4
      %s48 = scalar_select %p47, 0, %s46
      %s49 = sadd.s32 1, %s31
      %s50 = scalar_select %p47, %s49, %s31
      %p51 = scmp.ge.s32.totalorder %s50, 4
      %s52 = scalar_select %p51, 0, %s50
      %s53 = sadd.s32 1, %s30
      %s54 = scalar_select %p51, %s53, %s30
      %p55 = scmp.ge.s32.totalorder %s54, 2
      %s56 = scalar_select %p55, 0, %s54
      %s58 = sadd.s32 %s57, 1
      %p61 = scmp.eq.s32.totalorder %s23, 31
      %p62 = scmp.ne.s32.totalorder %s57, %s59
      %p63 = scmp.eq.s32.totalorder %s23, 0
      %p64 = por %p62, %p63
      %p65 = scmp.ne.s32.totalorder %s57, %s59
      %p66 = scmp.eq.s32.totalorder %s28, 31
      %p67 = por %p65, %p66
      %p68 = scmp.ne.s32.totalorder %s59, %s60
      %p69 = scmp.eq.s32.totalorder %s28, 0
      %p70 = por %p68, %p69
      %p71 = scmp.ne.s32.totalorder %s59, %s60
      %p72 = scmp.eq.s32.totalorder %s29, 31
      %p73 = por %p71, %p72
      %p75 = scmp.ne.s32.totalorder %s60, %s74
      %p76 = scmp.eq.s32.totalorder %s29, 0
      %p77 = por %p75, %p76
      %s78 = smul.u32 %s31, 16
      %s79 = smul.u32 %s32, 2
      %s80 = sadd.s32 %s78, %s79
      %s81 = sadd.s32 %s80, %s33
      %s82 = smul.u32 %s52, 16
      %s83 = smul.u32 %s48, 2
      %s84 = sadd.s32 %s82, %s83
      %s85 = sadd.s32 %s84, %s44
      %s86 = ssub.s32 %s30, %s56
      %s87 = ssub.s32 %s81, %s85
      %s88 = sor.u32 %s86, %s87
      %p89 = scmp.eq.s32.totalorder %s88, 0
      %s91 = sadd.s32 %s90, 1
      %s92 = scalar_select %p89, %s90, %s91
      %p95 = pneg %p89
      %p96 = scmp.eq.s32.totalorder %s23, 31
      %p97 = por %p95, %p96
      %p98 = scmp.ne.s32.totalorder %s90, %s93
      %p99 = scmp.eq.s32.totalorder %s23, 0
      %p100 = por %p98, %p99
      %p101 = scmp.ne.s32.totalorder %s90, %s93
      %p102 = scmp.eq.s32.totalorder %s28, 31
      %p103 = por %p101, %p102
      %p104 = scmp.ne.s32.totalorder %s93, %s94
      %p105 = scmp.eq.s32.totalorder %s28, 0
      %p106 = por %p104, %p105
      %p107 = scmp.ne.s32.totalorder %s93, %s94
      %p108 = scmp.eq.s32.totalorder %s29, 31
      %p109 = por %p107, %p108
      %p111 = scmp.ne.s32.totalorder %s94, %s110
      %p112 = scmp.eq.s32.totalorder %s29, 0
      %p113 = por %p111, %p112
      %s114 = smul.u32 %s31, 16
      %s115 = smul.u32 %s32, 2
      %s116 = sadd.s32 %s115, 1
      %s117 = sadd.s32 %s114, %s116
      %s118 = sadd.s32 %s117, %s33
      %s119 = smul.u32 %s52, 16
      %s120 = smul.u32 %s48, 2
      %s121 = sadd.s32 %s120, 1
      %s122 = sadd.s32 %s119, %s121
      %s123 = sadd.s32 %s122, %s44
      %s124 = ssub.s32 %s30, %s56
      %s125 = ssub.s32 %s118, %s123
      %s126 = sor.u32 %s124, %s125
      %p127 = scmp.eq.s32.totalorder %s126, 0
      %s129 = sadd.s32 %s128, 1
      %s130 = scalar_select %p127, %s128, %s129
      %p133 = pneg %p127
      %p134 = scmp.eq.s32.totalorder %s23, 31
      %p135 = por %p133, %p134
      %p136 = scmp.ne.s32.totalorder %s128, %s131
      %p137 = scmp.eq.s32.totalorder %s23, 0
      %p138 = por %p136, %p137
      %p139 = scmp.ne.s32.totalorder %s128, %s131
      %p140 = scmp.eq.s32.totalorder %s28, 31
      %p141 = por %p139, %p140
      %p142 = scmp.ne.s32.totalorder %s131, %s132
      %p143 = scmp.eq.s32.totalorder %s28, 0
      %p144 = por %p142, %p143
      %p145 = scmp.ne.s32.totalorder %s131, %s132
      %p146 = scmp.eq.s32.totalorder %s29, 31
      %p147 = por %p145, %p146
      %p149 = scmp.ne.s32.totalorder %s132, %s148
      %p150 = scmp.eq.s32.totalorder %s29, 0
      %p151 = por %p149, %p150
      %s152 = smul.u32 %s31, 2
      %s153 = sadd.s32 %s152, 1
      %s154 = smul.u32 %s153, 8
      %s155 = smul.u32 %s32, 2
      %s156 = sadd.s32 %s154, %s155
      %s157 = sadd.s32 %s156, %s33
      %s158 = smul.u32 %s52, 2
      %s159 = sadd.s32 %s158, 1
      %s160 = smul.u32 %s159, 8
      %s161 = smul.u32 %s48, 2
      %s162 = sadd.s32 %s160, %s161
      %s163 = sadd.s32 %s162, %s44
      %s164 = ssub.s32 %s30, %s56
      %s165 = ssub.s32 %s157, %s163
      %s166 = sor.u32 %s164, %s165
      %p167 = scmp.eq.s32.totalorder %s166, 0
      %s169 = sadd.s32 %s168, 1
      %s170 = scalar_select %p167, %s168, %s169
      %p173 = pneg %p167
      %p174 = scmp.eq.s32.totalorder %s23, 31
      %p175 = por %p173, %p174
      %p176 = scmp.ne.s32.totalorder %s168, %s171
      %p177 = scmp.eq.s32.totalorder %s23, 0
      %p178 = por %p176, %p177
      %p179 = scmp.ne.s32.totalorder %s168, %s171
      %p180 = scmp.eq.s32.totalorder %s28, 31
      %p181 = por %p179, %p180
      %p182 = scmp.ne.s32.totalorder %s171, %s172
      %p183 = scmp.eq.s32.totalorder %s28, 0
      %p184 = por %p182, %p183
      %p185 = scmp.ne.s32.totalorder %s171, %s172
      %p186 = scmp.eq.s32.totalorder %s29, 31
      %p187 = por %p185, %p186
      %p189 = scmp.ne.s32.totalorder %s172, %s188
      %p190 = scmp.eq.s32.totalorder %s29, 0
      %p191 = por %p189, %p190
      %s192 = smul.u32 %s31, 2
      %s193 = sadd.s32 %s192, 1
      %s194 = smul.u32 %s193, 8
      %s195 = smul.u32 %s32, 2
      %s196 = sadd.s32 %s195, 1
      %s197 = sadd.s32 %s194, %s196
      %s198 = sadd.s32 %s197, %s33
      %s199 = smul.u32 %s52, 2
      %s200 = sadd.s32 %s199, 1
      %s201 = smul.u32 %s200, 8
      %s202 = smul.u32 %s48, 2
      %s203 = sadd.s32 %s202, 1
      %s204 = sadd.s32 %s201, %s203
      %s205 = sadd.s32 %s204, %s44
      %s206 = ssub.s32 %s30, %s56
      %s207 = ssub.s32 %s198, %s205
      %s208 = sor.u32 %s206, %s207
      %p209 = scmp.eq.s32.totalorder %s208, 0
      %s211 = sadd.s32 %s210, 1
      %s212 = scalar_select %p209, %s210, %s211
      %p215 = pneg %p209
      %p216 = scmp.eq.s32.totalorder %s23, 31
      %p217 = por %p215, %p216
      %p218 = scmp.ne.s32.totalorder %s210, %s213
      %p219 = scmp.eq.s32.totalorder %s23, 0
      %p220 = por %p218, %p219
      %p221 = scmp.ne.s32.totalorder %s210, %s213
      %p222 = scmp.eq.s32.totalorder %s28, 31
      %p223 = por %p221, %p222
      %p224 = scmp.ne.s32.totalorder %s213, %s214
      %p225 = scmp.eq.s32.totalorder %s28, 0
      %p226 = por %p224, %p225
      %p227 = scmp.ne.s32.totalorder %s213, %s214
      %p228 = scmp.eq.s32.totalorder %s29, 31
      %p229 = por %p227, %p228
      %p231 = scmp.ne.s32.totalorder %s214, %s230
      %p232 = scmp.eq.s32.totalorder %s29, 0
      %p233 = por %p231, %p232
      %s234 = smul.u32 %s31, 4
      %s235 = sadd.s32 %s234, %s32
      %s236 = sadd.s32 %s235, %s33
      %s237 = smul.u32 %s52, 4
      %s238 = sadd.s32 %s237, %s48
      %s239 = sadd.s32 %s238, %s44
      %s240 = ssub.s32 %s30, %s56
      %s241 = ssub.s32 %s236, %s239
      %s242 = sor.u32 %s240, %s241
      %p243 = scmp.eq.s32.totalorder %s242, 0
      %s245 = sadd.s32 %s244, 1
      %s246 = scalar_select %p243, %s244, %s245
      %p249 = pneg %p243
      %p250 = scmp.eq.s32.totalorder %s23, 31
      %p251 = por %p249, %p250
      %p252 = scmp.ne.s32.totalorder %s244, %s247
      %p253 = scmp.eq.s32.totalorder %s23, 0
      %p254 = por %p252, %p253
      %p255 = scmp.ne.s32.totalorder %s244, %s247
      %p256 = scmp.eq.s32.totalorder %s28, 31
      %p257 = por %p255, %p256
      %p258 = scmp.ne.s32.totalorder %s247, %s248
      %p259 = scmp.eq.s32.totalorder %s28, 0
      %p260 = por %p258, %p259
      %p261 = scmp.ne.s32.totalorder %s247, %s248
      %p262 = scmp.eq.s32.totalorder %s29, 31
      %p263 = por %p261, %p262
      %p265 = scmp.ne.s32.totalorder %s248, %s264
      %p266 = scmp.eq.s32.totalorder %s29, 0
      %p267 = por %p265, %p266
      %p268 = scmp.le.s32.totalorder 1, %s23
      %p269 = scmp.lt.s32.totalorder %s23, 33
      %p270 = pnand %p268, %p269
      %p271 = pneg %p270
      // Predicated region
      $region9: #{tpu_custom_call.1} parent=5 // pred_check
        _
      $region10: #{tpu_custom_call.1} parent=5 // pred_check_branch
        %273 = sbr.rel (%p270) target = $region12
      $region11: #{tpu_custom_call.1} parent=5 // pred_region
        %s274 = ssub.s32 %s23, 1
        // Predicated region
        $region13: #{tpu_custom_call.1} parent=11 // pred_check
          %p275 = pneg %p70
        $region14: #{tpu_custom_call.1} parent=11 // pred_check_branch
          %277 = sbr.rel (%p275) target = $region16
        $region15: #{tpu_custom_call.1} parent=11 // pred_region
          _
        $region16: #{tpu_custom_call.1} parent=11 // pred_fallthru
          _
      $region12: #{tpu_custom_call.1} parent=5 // pred_fallthru
        _
      %p278 = scmp.lt.s32.totalorder %s23, 32
      // Predicated region
      $region17: #{tpu_custom_call.1} parent=5 // pred_check
        %p279 = pneg %p278
      $region18: #{tpu_custom_call.1} parent=5 // pred_check_branch
        %281 = sbr.rel (%p279) target = $region20
      $region19: #{tpu_custom_call.1} parent=5 // pred_region
        // Predicated region
        $region21: #{tpu_custom_call.1} parent=19 // pred_check
          %p282 = pneg %p100
        $region22: #{tpu_custom_call.1} parent=19 // pred_check_branch
          %284 = sbr.rel (%p282) target = $region24
        $region23: #{tpu_custom_call.1} parent=19 // pred_region
          %s285 = sand.u32 %s90, 1
          %s286 = scalar_lea.sflag [#allocation3], %s285
          %s287 = sand.u32 %s90, 1
          %s288 = smul.addr %s287, 4
          %s289 = scalar_lea.vmem [#allocation2], %s288
          %s290 = smul.u32 %s31, 16
          %s291 = smul.u32 %s32, 2
          %s292 = sadd.s32 %s290, %s291
          %s293 = sadd.s32 %s292, %s33
          %s295 = ssub.s32 64, 64
          %296 = vsyncadd %s286, %s295
          %s297 = smul.addr %s30, 64
          %s298 = sadd.s32 %s293, %s297
          %s299 = smul.addr %s298, 64
          %s300 = scalar_lea.hbm %s1, %s299
          %s302 = sshll.u32 %s289, 4
          %s303 = int_to_ptr.vmem [resolvable:$true] %s302
          %305 = dma.hbm_to_vmem [thread:$0]  %s300, 64, %s303, %s286
        $region24: #{tpu_custom_call.1} parent=19 // pred_fallthru
          _
        // Predicated region
        $region25: #{tpu_custom_call.1} parent=19 // pred_check
          %p306 = pneg %p138
        $region26: #{tpu_custom_call.1} parent=19 // pred_check_branch
          %308 = sbr.rel (%p306) target = $region28
        $region27: #{tpu_custom_call.1} parent=19 // pred_region
          %s309 = sand.u32 %s23, 1
          %s310 = scalar_lea.sflag [#allocation6], %s309
          %s311 = sand.u32 %s128, 1
          %s312 = smul.addr %s311, 4
          %s313 = scalar_lea.vmem [#allocation5], %s312
          %s314 = smul.u32 %s31, 16
          %s315 = smul.u32 %s32, 2
          %s316 = sadd.s32 %s315, 1
          %s317 = sadd.s32 %s314, %s316
          %s318 = sadd.s32 %s317, %s33
          %s320 = ssub.s32 64, 64
          %321 = vsyncadd %s310, %s320
          %s322 = smul.addr %s30, 64
          %s323 = sadd.s32 %s318, %s322
          %s324 = smul.addr %s323, 64
          %s325 = scalar_lea.hbm %s2, %s324
          %s327 = sshll.u32 %s313, 4
          %s328 = int_to_ptr.vmem [resolvable:$true] %s327
          %330 = dma.hbm_to_vmem [thread:$0]  %s325, 64, %s328, %s310
        $region28: #{tpu_custom_call.1} parent=19 // pred_fallthru
          _
        // Predicated region
        $region29: #{tpu_custom_call.1} parent=19 // pred_check
          %p331 = pneg %p178
        $region30: #{tpu_custom_call.1} parent=19 // pred_check_branch
          %333 = sbr.rel (%p331) target = $region32
        $region31: #{tpu_custom_call.1} parent=19 // pred_region
          %s334 = sand.u32 %s23, 1
          %s335 = scalar_lea.sflag [#allocation6], %s334
          %s336 = sand.u32 %s168, 1
          %s337 = smul.addr %s336, 4
          %s338 = scalar_lea.vmem [#allocation7], %s337
          %s339 = smul.u32 %s31, 2
          %s340 = sadd.s32 %s339, 1
          %s341 = smul.u32 %s340, 8
          %s342 = smul.u32 %s32, 2
          %s343 = sadd.s32 %s341, %s342
          %s344 = sadd.s32 %s343, %s33
          %s346 = ssub.s32 64, 64
          %347 = vsyncadd %s335, %s346
          %s348 = smul.addr %s30, 64
          %s349 = sadd.s32 %s344, %s348
          %s350 = smul.addr %s349, 64
          %s351 = scalar_lea.hbm %s3, %s350
          %s353 = sshll.u32 %s338, 4
          %s354 = int_to_ptr.vmem [resolvable:$true] %s353
          %356 = dma.hbm_to_vmem [thread:$0]  %s351, 64, %s354, %s335
        $region32: #{tpu_custom_call.1} parent=19 // pred_fallthru
          _
        // Predicated region
        $region33: #{tpu_custom_call.1} parent=19 // pred_check
          %p357 = pneg %p220
        $region34: #{tpu_custom_call.1} parent=19 // pred_check_branch
          %359 = sbr.rel (%p357) target = $region36
        $region35: #{tpu_custom_call.1} parent=19 // pred_region
          %s360 = sand.u32 %s210, 1
          %s361 = scalar_lea.sflag [#allocation9], %s360
          %s362 = sand.u32 %s210, 1
          %s363 = smul.addr %s362, 4
          %s364 = scalar_lea.vmem [#allocation8], %s363
          %s365 = smul.u32 %s31, 2
          %s366 = sadd.s32 %s365, 1
          %s367 = smul.u32 %s366, 8
          %s368 = smul.u32 %s32, 2
          %s369 = sadd.s32 %s368, 1
          %s370 = sadd.s32 %s367, %s369
          %s371 = sadd.s32 %s370, %s33
          %s373 = ssub.s32 64, 64
          %374 = vsyncadd %s361, %s373
          %s375 = smul.addr %s30, 64
          %s376 = sadd.s32 %s371, %s375
          %s377 = smul.addr %s376, 64
          %s378 = scalar_lea.hbm %s4, %s377
          %s380 = sshll.u32 %s364, 4
          %s381 = int_to_ptr.vmem [resolvable:$true] %s380
          %383 = dma.hbm_to_vmem [thread:$0]  %s378, 64, %s381, %s361
        $region36: #{tpu_custom_call.1} parent=19 // pred_fallthru
          _
      $region20: #{tpu_custom_call.1} parent=5 // pred_fallthru
        _
      %p384 = scmp.le.s32.totalorder 1, %s23
      %p385 = scmp.lt.s32.totalorder %s23, 33
      %p386 = pnand %p384, %p385
      %p387 = pneg %p386
      // Predicated region
      $region37: #{tpu_custom_call.1} parent=5 // pred_check
        _
      $region38: #{tpu_custom_call.1} parent=5 // pred_check_branch
        %389 = sbr.rel (%p386) target = $region40
      $region39: #{tpu_custom_call.1} parent=5 // pred_region
        %s390 = ssub.s32 %s23, 1
        %s391 = sand.u32 %s93, 1
        %s392 = scalar_lea.sflag [#allocation3], %s391
        %s393 = sand.u32 %s93, 1
        %s394 = smul.addr %s393, 4
        %s395 = scalar_lea.vmem [#allocation2], %s394
        // Predicated region
        $region41: #{tpu_custom_call.1} parent=39 // pred_check
          %p396 = pneg %p106
        $region42: #{tpu_custom_call.1} parent=39 // pred_check_branch
          %398 = sbr.rel (%p396) target = $region44
        $region43: #{tpu_custom_call.1} parent=39 // pred_region
          %399 = dma.done %s392, 64
        $region44: #{tpu_custom_call.1} parent=39 // pred_fallthru
          _
        %s400 = sand.u32 %s28, 1
        %s401 = scalar_lea.sflag [#allocation6], %s400
        %s402 = sand.u32 %s131, 1
        %s403 = smul.addr %s402, 4
        %s404 = scalar_lea.vmem [#allocation5], %s403
        // Predicated region
        $region45: #{tpu_custom_call.1} parent=39 // pred_check
          %p405 = pneg %p144
        $region46: #{tpu_custom_call.1} parent=39 // pred_check_branch
          %407 = sbr.rel (%p405) target = $region48
        $region47: #{tpu_custom_call.1} parent=39 // pred_region
          %408 = dma.done %s401, 64
        $region48: #{tpu_custom_call.1} parent=39 // pred_fallthru
          _
        %s409 = sand.u32 %s28, 1
        %s410 = scalar_lea.sflag [#allocation6], %s409
        %s411 = sand.u32 %s171, 1
        %s412 = smul.addr %s411, 4
        %s413 = scalar_lea.vmem [#allocation7], %s412
        // Predicated region
        $region49: #{tpu_custom_call.1} parent=39 // pred_check
          %p414 = pneg %p184
        $region50: #{tpu_custom_call.1} parent=39 // pred_check_branch
          %416 = sbr.rel (%p414) target = $region52
        $region51: #{tpu_custom_call.1} parent=39 // pred_region
          %417 = dma.done %s410, 64
        $region52: #{tpu_custom_call.1} parent=39 // pred_fallthru
          _
        %s418 = sand.u32 %s213, 1
        %s419 = scalar_lea.sflag [#allocation9], %s418
        %s420 = sand.u32 %s213, 1
        %s421 = smul.addr %s420, 4
        %s422 = scalar_lea.vmem [#allocation8], %s421
        // Predicated region
        $region53: #{tpu_custom_call.1} parent=39 // pred_check
          %p423 = pneg %p226
        $region54: #{tpu_custom_call.1} parent=39 // pred_check_branch
          %425 = sbr.rel (%p423) target = $region56
        $region55: #{tpu_custom_call.1} parent=39 // pred_region
          %426 = dma.done %s419, 64
        $region56: #{tpu_custom_call.1} parent=39 // pred_fallthru
          _
        %p427 = pneg %p70
        %p428 = pneg %p67
        %s429 = sand.u32 %s93, 1
        %s430 = scalar_lea.sflag [#allocation3], %s429
        %s431 = sand.u32 %s93, 1
        %s432 = smul.addr %s431, 4
        %s433 = scalar_lea.vmem [#allocation2], %s432
        %p434 = pneg %p106
        %p435 = pneg %p103
        %s436 = sand.u32 %s28, 1
        %s437 = scalar_lea.sflag [#allocation6], %s436
        %s438 = sand.u32 %s131, 1
        %s439 = smul.addr %s438, 4
        %s440 = scalar_lea.vmem [#allocation5], %s439
        %p441 = pneg %p144
        %p442 = pneg %p141
        %s443 = sand.u32 %s28, 1
        %s444 = scalar_lea.sflag [#allocation6], %s443
        %s445 = sand.u32 %s171, 1
        %s446 = smul.addr %s445, 4
        %s447 = scalar_lea.vmem [#allocation7], %s446
        %p448 = pneg %p184
        %p449 = pneg %p181
        %s450 = sand.u32 %s213, 1
        %s451 = scalar_lea.sflag [#allocation9], %s450
        %s452 = sand.u32 %s213, 1
        %s453 = smul.addr %s452, 4
        %s454 = scalar_lea.vmem [#allocation8], %s453
        %p455 = pneg %p226
        %p456 = pneg %p223
        %p457 = pneg %p260
        %p458 = pneg %p257
        %s459 = sand.u32 %s247, 1
        %s460 = scalar_lea.sflag [#allocation4], %s459
        %s461 = sand.u32 %s247, 1
        %s462 = smul.addr %s461, 4
        %s463 = scalar_lea.vmem [#allocation10], %s462
        %s464 = smul.u32 %s35, 16
        %s465 = smul.u32 %s36, 2
        %s466 = sadd.s32 %s464, %s465
        %s467 = sadd.s32 %s466, %s37
        %s468 = smul.u32 %s35, 16
        %s469 = smul.u32 %s36, 2
        %s470 = sadd.s32 %s469, 1
        %s471 = sadd.s32 %s468, %s470
        %s472 = sadd.s32 %s471, %s37
        %s473 = smul.u32 %s35, 2
        %s474 = sadd.s32 %s473, 1
        %s475 = smul.u32 %s474, 8
        %s476 = smul.u32 %s36, 2
        %s477 = sadd.s32 %s475, %s476
        %s478 = sadd.s32 %s477, %s37
        %s479 = smul.u32 %s35, 2
        %s480 = sadd.s32 %s479, 1
        %s481 = smul.u32 %s480, 8
        %s482 = smul.u32 %s36, 2
        %s483 = sadd.s32 %s482, 1
        %s484 = sadd.s32 %s481, %s483
        %s485 = sadd.s32 %s484, %s37
        %s486 = smul.u32 %s35, 4
        %s487 = sadd.s32 %s486, %s36
        %s488 = sadd.s32 %s487, %s37
        %v489 = vld [vmem:[%s0] sm:$0xff]
        %v490 = vld [vmem:[%s0 + $0x8] sm:$0xff]
        %v491 = vld [vmem:[%s395] sm:$0xf]
        %s492 = scalar_lea.vmem %s0, 16
        %v493 = vld [vmem:[%s492] sm:$0xff]
        %v494 = vld [vmem:[%s492 + $0x8] sm:$0xff]
        %v495 = vld [vmem:[%s404] sm:$0xf]
        %vm496 = vcmask 31744
        %v498 = vsel %vm496, %v493, 0
        %v501 = vsel %vm496, %v494, 0
        %vm503 = vcmask 1043456
        %v505 = vsel %vm503, %v495, 0
        %507 = vmatprep.subr.mxu0 0.0
        %508 = vmatpush1.msra.mxu0 %v505
        %509 = vmatprep.subr.mxu0 0.0
        %510 = vmatpush1.msra.mxu0 0.0
        %511 = vmatprep.subr.mxu0 0.0
        %512 = vmatpush1.msra.mxu0 0.0
        %513 = vmatprep.subr.mxu0 0.0
        %514 = vmatpush1.msra.mxu0 0.0
        %515 = vmatprep.subr.mxu0 0.0
        %516 = vmatpush1.msra.mxu0 0.0
        %517 = vmatprep.subr.mxu0 0.0
        %518 = vmatpush1.msra.mxu0 0.0
        %519 = vmatprep.subr.mxu0 0.0
        %520 = vmatpush1.msra.mxu0 0.0
        %521 = vmatprep.subr.mxu0 0.0
        %522 = vmatpush1.msra.mxu0 0.0
        %523 = vmatprep.subr.mxu0 0.0
        %524 = vmatpush1.msra.mxu0 0.0
        %525 = vmatprep.subr.mxu0 0.0
        %526 = vmatpush1.msra.mxu0 0.0
        %527 = vmatprep.subr.mxu0 0.0
        %528 = vmatpush1.msra.mxu0 0.0
        %529 = vmatprep.subr.mxu0 0.0
        %530 = vmatpush1.msra.mxu0 0.0
        %531 = vmatprep.subr.mxu0 0.0
        %532 = vmatpush1.msra.mxu0 0.0
        %533 = vmatprep.subr.mxu0 0.0
        %534 = vmatpush1.msra.mxu0 0.0
        %535 = vmatprep.subr.mxu0 0.0
        %536 = vmatpush1.msra.mxu0 0.0
        %537 = vmatprep.subr.mxu0 0.0
        %538 = vmatpush1.msra.mxu0 0.0
        %539 = vmatprep.subr.mxu0 0.0
        %540 = vmatpush1.msra.mxu0 0.0
        %541 = vmatprep.subr.mxu0 0.0
        %542 = vmatpush1.msra.mxu0 0.0
        %543 = vmatprep.subr.mxu0 0.0
        %544 = vmatpush1.msra.mxu0 0.0
        %545 = vmatprep.subr.mxu0 0.0
        %546 = vmatpush1.msra.mxu0 0.0
        %547 = vmatprep.subr.mxu0 0.0
        %548 = vmatpush1.msra.mxu0 0.0
        %549 = vmatprep.subr.mxu0 0.0
        %550 = vmatpush1.msra.mxu0 0.0
        %551 = vmatprep.subr.mxu0 0.0
        %552 = vmatpush1.msra.mxu0 0.0
        %553 = vmatprep.subr.mxu0 0.0
        %554 = vmatpush1.msra.mxu0 0.0
        %555 = vmatprep.subr.mxu0 0.0
        %556 = vmatpush1.msra.mxu0 0.0
        %557 = vmatprep.subr.mxu0 0.0
        %558 = vmatpush1.msra.mxu0 0.0
        %559 = vmatprep.subr.mxu0 0.0
        %560 = vmatpush1.msra.mxu0 0.0
        %561 = vmatprep.subr.mxu0 0.0
        %562 = vmatpush1.msra.mxu0 0.0
        %563 = vmatprep.subr.mxu0 0.0
        %564 = vmatpush1.msra.mxu0 0.0
        %565 = vmatprep.subr.mxu0 0.0
        %566 = vmatpush1.msra.mxu0 0.0
        %567 = vmatprep.subr.mxu0 0.0
        %568 = vmatpush1.msra.mxu0 0.0
        %569 = vmatprep.subr.mxu0 0.0
        %570 = vmatpush1.msra.mxu0 0.0
        %571 = vmatprep.mubr.f32.mxu0 0.0
        %572 = vmatmul.mubr.f32.gmra.mrb[0].mxu0 %v498
        %v573 = vpop.f32.mrb[0].mxu0
        %v574 = vadd.f32 0.0, %v573
        %v575 = vpop.f32.mrb[0].mxu0
        %576 = vmatprep.mubr.f32.mxu0 0.0
        %577 = vmatmul.mubr.f32.gmra.mrb[0].mxu0 %v501
        %v578 = vpop.f32.mrb[0].mxu0
        %v579 = vadd.f32 0.0, %v578
        %v580 = vpop.f32.mrb[0].mxu0
        %581 = vdwg.mxu0
        %v583 = vsel %vm496, %v489, 0
        %v586 = vsel %vm496, %v490, 0
        %v589 = vsel %vm503, %v491, 0
        %591 = vmatprep.subr.mxu0 0.0
        %592 = vmatpush1.msra.mxu0 %v589
        %593 = vmatprep.subr.mxu0 0.0
        %594 = vmatpush1.msra.mxu0 0.0
        %595 = vmatprep.subr.mxu0 0.0
        %596 = vmatpush1.msra.mxu0 0.0
        %597 = vmatprep.subr.mxu0 0.0
        %598 = vmatpush1.msra.mxu0 0.0
        %599 = vmatprep.subr.mxu0 0.0
        %600 = vmatpush1.msra.mxu0 0.0
        %601 = vmatprep.subr.mxu0 0.0
        %602 = vmatpush1.msra.mxu0 0.0
        %603 = vmatprep.subr.mxu0 0.0
        %604 = vmatpush1.msra.mxu0 0.0
        %605 = vmatprep.subr.mxu0 0.0
        %606 = vmatpush1.msra.mxu0 0.0
        %607 = vmatprep.subr.mxu0 0.0
        %608 = vmatpush1.msra.mxu0 0.0
        %609 = vmatprep.subr.mxu0 0.0
        %610 = vmatpush1.msra.mxu0 0.0
        %611 = vmatprep.subr.mxu0 0.0
        %612 = vmatpush1.msra.mxu0 0.0
        %613 = vmatprep.subr.mxu0 0.0
        %614 = vmatpush1.msra.mxu0 0.0
        %615 = vmatprep.subr.mxu0 0.0
        %616 = vmatpush1.msra.mxu0 0.0
        %617 = vmatprep.subr.mxu0 0.0
        %618 = vmatpush1.msra.mxu0 0.0
        %619 = vmatprep.subr.mxu0 0.0
        %620 = vmatpush1.msra.mxu0 0.0
        %621 = vmatprep.subr.mxu0 0.0
        %622 = vmatpush1.msra.mxu0 0.0
        %623 = vmatprep.subr.mxu0 0.0
        %624 = vmatpush1.msra.mxu0 0.0
        %625 = vmatprep.subr.mxu0 0.0
        %626 = vmatpush1.msra.mxu0 0.0
        %627 = vmatprep.subr.mxu0 0.0
        %628 = vmatpush1.msra.mxu0 0.0
        %629 = vmatprep.subr.mxu0 0.0
        %630 = vmatpush1.msra.mxu0 0.0
        %631 = vmatprep.subr.mxu0 0.0
        %632 = vmatpush1.msra.mxu0 0.0
        %633 = vmatprep.subr.mxu0 0.0
        %634 = vmatpush1.msra.mxu0 0.0
        %635 = vmatprep.subr.mxu0 0.0
        %636 = vmatpush1.msra.mxu0 0.0
        %637 = vmatprep.subr.mxu0 0.0
        %638 = vmatpush1.msra.mxu0 0.0
        %639 = vmatprep.subr.mxu0 0.0
        %640 = vmatpush1.msra.mxu0 0.0
        %641 = vmatprep.subr.mxu0 0.0
        %642 = vmatpush1.msra.mxu0 0.0
        %643 = vmatprep.subr.mxu0 0.0
        %644 = vmatpush1.msra.mxu0 0.0
        %645 = vmatprep.subr.mxu0 0.0
        %646 = vmatpush1.msra.mxu0 0.0
        %647 = vmatprep.subr.mxu0 0.0
        %648 = vmatpush1.msra.mxu0 0.0
        %649 = vmatprep.subr.mxu0 0.0
        %650 = vmatpush1.msra.mxu0 0.0
        %651 = vmatprep.subr.mxu0 0.0
        %652 = vmatpush1.msra.mxu0 0.0
        %653 = vmatprep.subr.mxu0 0.0
        %654 = vmatpush1.msra.mxu0 0.0
        %655 = vmatprep.mubr.f32.mxu0 0.0
        %656 = vmatmul.mubr.f32.gmra.mrb[0].mxu0 %v583
        %v657 = vpop.f32.mrb[0].mxu0
        %v658 = vadd.f32 %v574, %v657
        %v659 = vpop.f32.mrb[0].mxu0
        %660 = vmatprep.mubr.f32.mxu0 0.0
        %661 = vmatmul.mubr.f32.gmra.mrb[0].mxu0 %v586
        %v662 = vpop.f32.mrb[0].mxu0
        %v663 = vadd.f32 %v579, %v662
        %v664 = vpop.f32.mrb[0].mxu0
        %665 = vdwg.mxu0
        %s666 = scalar_lea.vmem %s0, 32
        %v667 = vld [vmem:[%s666] sm:$0xff]
        %v668 = vld [vmem:[%s666 + $0x8] sm:$0xff]
        %v669 = vld [vmem:[%s413] sm:$0xf]
        %v671 = vsel %vm496, %v667, 0
        %v674 = vsel %vm496, %v668, 0
        %v677 = vsel %vm503, %v669, 0
        %679 = vmatprep.subr.mxu0 0.0
        %680 = vmatpush1.msra.mxu0 %v677
        %681 = vmatprep.subr.mxu0 0.0
        %682 = vmatpush1.msra.mxu0 0.0
        %683 = vmatprep.subr.mxu0 0.0
        %684 = vmatpush1.msra.mxu0 0.0
        %685 = vmatprep.subr.mxu0 0.0
        %686 = vmatpush1.msra.mxu0 0.0
        %687 = vmatprep.subr.mxu0 0.0
        %688 = vmatpush1.msra.mxu0 0.0
        %689 = vmatprep.subr.mxu0 0.0
        %690 = vmatpush1.msra.mxu0 0.0
        %691 = vmatprep.subr.mxu0 0.0
        %692 = vmatpush1.msra.mxu0 0.0
        %693 = vmatprep.subr.mxu0 0.0
        %694 = vmatpush1.msra.mxu0 0.0
        %695 = vmatprep.subr.mxu0 0.0
        %696 = vmatpush1.msra.mxu0 0.0
        %697 = vmatprep.subr.mxu0 0.0
        %698 = vmatpush1.msra.mxu0 0.0
        %699 = vmatprep.subr.mxu0 0.0
        %700 = vmatpush1.msra.mxu0 0.0
        %701 = vmatprep.subr.mxu0 0.0
        %702 = vmatpush1.msra.mxu0 0.0
        %703 = vmatprep.subr.mxu0 0.0
        %704 = vmatpush1.msra.mxu0 0.0
        %705 = vmatprep.subr.mxu0 0.0
        %706 = vmatpush1.msra.mxu0 0.0
        %707 = vmatprep.subr.mxu0 0.0
        %708 = vmatpush1.msra.mxu0 0.0
        %709 = vmatprep.subr.mxu0 0.0
        %710 = vmatpush1.msra.mxu0 0.0
        %711 = vmatprep.subr.mxu0 0.0
        %712 = vmatpush1.msra.mxu0 0.0
        %713 = vmatprep.subr.mxu0 0.0
        %714 = vmatpush1.msra.mxu0 0.0
        %715 = vmatprep.subr.mxu0 0.0
        %716 = vmatpush1.msra.mxu0 0.0
        %717 = vmatprep.subr.mxu0 0.0
        %718 = vmatpush1.msra.mxu0 0.0
        %719 = vmatprep.subr.mxu0 0.0
        %720 = vmatpush1.msra.mxu0 0.0
        %721 = vmatprep.subr.mxu0 0.0
        %722 = vmatpush1.msra.mxu0 0.0
        %723 = vmatprep.subr.mxu0 0.0
        %724 = vmatpush1.msra.mxu0 0.0
        %725 = vmatprep.subr.mxu0 0.0
        %726 = vmatpush1.msra.mxu0 0.0
        %727 = vmatprep.subr.mxu0 0.0
        %728 = vmatpush1.msra.mxu0 0.0
        %729 = vmatprep.subr.mxu0 0.0
        %730 = vmatpush1.msra.mxu0 0.0
        %731 = vmatprep.subr.mxu0 0.0
        %732 = vmatpush1.msra.mxu0 0.0
        %733 = vmatprep.subr.mxu0 0.0
        %734 = vmatpush1.msra.mxu0 0.0
        %735 = vmatprep.subr.mxu0 0.0
        %736 = vmatpush1.msra.mxu0 0.0
        %737 = vmatprep.subr.mxu0 0.0
        %738 = vmatpush1.msra.mxu0 0.0
        %739 = vmatprep.subr.mxu0 0.0
        %740 = vmatpush1.msra.mxu0 0.0
        %741 = vmatprep.subr.mxu0 0.0
        %742 = vmatpush1.msra.mxu0 0.0
        %743 = vmatprep.mubr.f32.mxu0 0.0
        %744 = vmatmul.mubr.f32.gmra.mrb[0].mxu0 %v671
        %v745 = vpop.f32.mrb[0].mxu0
        %v746 = vadd.f32 0.0, %v745
        %v747 = vpop.f32.mrb[0].mxu0
        %748 = vmatprep.mubr.f32.mxu0 0.0
        %749 = vmatmul.mubr.f32.gmra.mrb[0].mxu0 %v674
        %v750 = vpop.f32.mrb[0].mxu0
        %v751 = vadd.f32 0.0, %v750
        %v752 = vpop.f32.mrb[0].mxu0
        %753 = vdwg.mxu0
        %v754 = vadd.f32 %v658, %v746
        %v755 = vadd.f32 %v663, %v751
        %s756 = scalar_lea.vmem %s0, 48
        %v757 = vld [vmem:[%s756] sm:$0xff]
        %v758 = vld [vmem:[%s756 + $0x8] sm:$0xff]
        %v759 = vld [vmem:[%s422] sm:$0xf]
        %v761 = vsel %vm496, %v757, 0
        %v764 = vsel %vm496, %v758, 0
        %v767 = vsel %vm503, %v759, 0
        %769 = vmatprep.subr.mxu0 0.0
        %770 = vmatpush1.msra.mxu0 %v767
        %771 = vmatprep.subr.mxu0 0.0
        %772 = vmatpush1.msra.mxu0 0.0
        %773 = vmatprep.subr.mxu0 0.0
        %774 = vmatpush1.msra.mxu0 0.0
        %775 = vmatprep.subr.mxu0 0.0
        %776 = vmatpush1.msra.mxu0 0.0
        %777 = vmatprep.subr.mxu0 0.0
        %778 = vmatpush1.msra.mxu0 0.0
        %779 = vmatprep.subr.mxu0 0.0
        %780 = vmatpush1.msra.mxu0 0.0
        %781 = vmatprep.subr.mxu0 0.0
        %782 = vmatpush1.msra.mxu0 0.0
        %783 = vmatprep.subr.mxu0 0.0
        %784 = vmatpush1.msra.mxu0 0.0
        %785 = vmatprep.subr.mxu0 0.0
        %786 = vmatpush1.msra.mxu0 0.0
        %787 = vmatprep.subr.mxu0 0.0
        %788 = vmatpush1.msra.mxu0 0.0
        %789 = vmatprep.subr.mxu0 0.0
        %790 = vmatpush1.msra.mxu0 0.0
        %791 = vmatprep.subr.mxu0 0.0
        %792 = vmatpush1.msra.mxu0 0.0
        %793 = vmatprep.subr.mxu0 0.0
        %794 = vmatpush1.msra.mxu0 0.0
        %795 = vmatprep.subr.mxu0 0.0
        %796 = vmatpush1.msra.mxu0 0.0
        %797 = vmatprep.subr.mxu0 0.0
        %798 = vmatpush1.msra.mxu0 0.0
        %799 = vmatprep.subr.mxu0 0.0
        %800 = vmatpush1.msra.mxu0 0.0
        %801 = vmatprep.subr.mxu0 0.0
        %802 = vmatpush1.msra.mxu0 0.0
        %803 = vmatprep.subr.mxu0 0.0
        %804 = vmatpush1.msra.mxu0 0.0
        %805 = vmatprep.subr.mxu0 0.0
        %806 = vmatpush1.msra.mxu0 0.0
        %807 = vmatprep.subr.mxu0 0.0
        %808 = vmatpush1.msra.mxu0 0.0
        %809 = vmatprep.subr.mxu0 0.0
        %810 = vmatpush1.msra.mxu0 0.0
        %811 = vmatprep.subr.mxu0 0.0
        %812 = vmatpush1.msra.mxu0 0.0
        %813 = vmatprep.subr.mxu0 0.0
        %814 = vmatpush1.msra.mxu0 0.0
        %815 = vmatprep.subr.mxu0 0.0
        %816 = vmatpush1.msra.mxu0 0.0
        %817 = vmatprep.subr.mxu0 0.0
        %818 = vmatpush1.msra.mxu0 0.0
        %819 = vmatprep.subr.mxu0 0.0
        %820 = vmatpush1.msra.mxu0 0.0
        %821 = vmatprep.subr.mxu0 0.0
        %822 = vmatpush1.msra.mxu0 0.0
        %823 = vmatprep.subr.mxu0 0.0
        %824 = vmatpush1.msra.mxu0 0.0
        %825 = vmatprep.subr.mxu0 0.0
        %826 = vmatpush1.msra.mxu0 0.0
        %827 = vmatprep.subr.mxu0 0.0
        %828 = vmatpush1.msra.mxu0 0.0
        %829 = vmatprep.subr.mxu0 0.0
        %830 = vmatpush1.msra.mxu0 0.0
        %831 = vmatprep.subr.mxu0 0.0
        %832 = vmatpush1.msra.mxu0 0.0
        %833 = vmatprep.mubr.f32.mxu0 0.0
        %834 = vmatmul.mubr.f32.gmra.mrb[0].mxu0 %v761
        %v835 = vpop.f32.mrb[0].mxu0
        %v836 = vadd.f32 0.0, %v835
        %v837 = vpop.f32.mrb[0].mxu0
        %838 = vmatprep.mubr.f32.mxu0 0.0
        %839 = vmatmul.mubr.f32.gmra.mrb[0].mxu0 %v764
        %v840 = vpop.f32.mrb[0].mxu0
        %v841 = vadd.f32 0.0, %v840
        %v842 = vpop.f32.mrb[0].mxu0
        %843 = vdwg.mxu0
        %v844 = vadd.f32 %v754, %v836
        %v845 = vadd.f32 %v755, %v841
        %847 = vrot.lane.b32.xlu0 %v844, 127
        %v848 = vpop.permute.xlu0 %847
        %v851 = vrot.slane %v848, 4
        %v853 = vadd.f32 %v844, %v851
        %855 = vrot.lane.b32.xlu0 %v845, 112
        %v856 = vpop.permute.xlu0 %855
        %v858 = vadd.f32 %v853, %v856
        %859 = vrot.lane.b32.xlu0 %v845, 111
        %v860 = vpop.permute.xlu0 %859
        %v863 = vrot.slane %v860, 4
        %v865 = vadd.f32 %v858, %v863
        %866 = vst [vmem:[%s463] sm:$0xf] %v865
        %s867 = sand.u32 %s247, 1
        %s868 = scalar_lea.sflag [#allocation4], %s867
        %s869 = sand.u32 %s247, 1
        %s870 = smul.addr %s869, 4
        %s871 = scalar_lea.vmem [#allocation10], %s870
        // Predicated region
        $region57: #{tpu_custom_call.1} parent=39 // pred_check
          %p872 = pneg %p257
        $region58: #{tpu_custom_call.1} parent=39 // pred_check_branch
          %874 = sbr.rel (%p872) target = $region60
        $region59: #{tpu_custom_call.1} parent=39 // pred_region
          %s875 = smul.u32 %s35, 4
          %s876 = sadd.s32 %s875, %s36
          %s877 = sadd.s32 %s876, %s37
          %s879 = ssub.s32 64, 64
          %880 = vsyncadd %s868, %s879
          %s881 = smul.addr %s34, 16
          %s882 = sadd.s32 %s877, %s881
          %s883 = smul.addr %s882, 64
          %s884 = scalar_lea.hbm %s5, %s883
          %s886 = sshll.u32 %s871, 4
          %s887 = int_to_ptr.vmem [resolvable:$true] %s886
          %889 = dma.vmem_to_hbm [thread:$0]  %s887, 64, %s884, %s868
        $region60: #{tpu_custom_call.1} parent=39 // pred_fallthru
          _
      $region40: #{tpu_custom_call.1} parent=5 // pred_fallthru
        _
      %p890 = scmp.le.s32.totalorder 2, %s23
      // Predicated region
      $region61: #{tpu_custom_call.1} parent=5 // pred_check
        %p891 = pneg %p890
      $region62: #{tpu_custom_call.1} parent=5 // pred_check_branch
        %893 = sbr.rel (%p891) target = $region64
      $region63: #{tpu_custom_call.1} parent=5 // pred_region
        %s894 = ssub.s32 %s23, 2
        // Predicated region
        $region65: #{tpu_custom_call.1} parent=63 // pred_check
          %p895 = pneg %p263
        $region66: #{tpu_custom_call.1} parent=63 // pred_check_branch
          %897 = sbr.rel (%p895) target = $region68
        $region67: #{tpu_custom_call.1} parent=63 // pred_region
          %s898 = sand.u32 %s248, 1
          %s899 = scalar_lea.sflag [#allocation4], %s898
          %s900 = sand.u32 %s248, 1
          %s901 = smul.addr %s900, 4
          %s902 = scalar_lea.vmem [#allocation10], %s901
          %903 = dma.done %s899, 64
        $region68: #{tpu_custom_call.1} parent=63 // pred_fallthru
          _
      $region64: #{tpu_custom_call.1} parent=5 // pred_fallthru
        _
    $region6: #{tpu_custom_call.1} parent=1 // loop_footer
      %s27 = sadd.s32 1, %s23
    $region7: #{tpu_custom_call.1} parent=1 // loop_footer_branch
      %22 = sbr.rel target = $region3
    $region8: #{tpu_custom_call.1} parent=1 // loop_exit
      _
    %904 = vsyncpa [#allocation3], 1
    %s905 = scalar_lea.sflag [#allocation3], 1
    %906 = vsyncpa %s905, 1
    %907 = vsyncpa [#allocation6], 1
    %s908 = scalar_lea.sflag [#allocation6], 1
    %909 = vsyncpa %s908, 1
    %910 = vsyncpa [#allocation9], 1
    %s911 = scalar_lea.sflag [#allocation9], 1
    %912 = vsyncpa %s911, 1
    %913 = vsyncpa [#allocation4], 1
    %s914 = scalar_lea.sflag [#allocation4], 1
    %915 = vsyncpa %s914, 1

</llo_original>
